<compile_context>
chip_gen: v6e
topology: v6e:2x2x1
jax: 0.10.0
libtpu: 0.0.40
codegen_flags: <defaults>
</compile_context>

<pallas_src>
import functools

import jax
import jax.numpy as jnp
from jax.experimental import pallas as pl
from jax.experimental.pallas import tpu as pltpu

_EPS = 1e-5  # nn.BatchNorm2d default


def _pick_tile(total, target, quantum):
    """Largest multiple of `quantum` that divides `total` and is <= target.

    Falls back to the full extent (always a legal block shape) when the array
    is small or no suitable divisor exists.
    """
    if total <= target or total % quantum != 0:
        return total
    t = (target // quantum) * quantum
    while t >= quantum:
        if total % t == 0:
            return t
        t -= quantum
    return total


# --------------------------------------------------------------------------
# Fused small-tensor path: whole slab resident in VMEM, one launch.
# --------------------------------------------------------------------------
def _fused_kernel(x_ref, p_ref, o_ref, *, count, eps):
    # x_ref: (N, C, HWp); p_ref: (3, C, 1) = stacked (gamma, beta, alpha).
    x = x_ref[...].astype(jnp.float32)
    s = jnp.sum(jnp.sum(x, axis=2, keepdims=True), axis=0, keepdims=True)      # (1,C,1)
    q = jnp.sum(jnp.sum(x * x, axis=2, keepdims=True), axis=0, keepdims=True)  # (1,C,1)
    mean = s / count
    var = jnp.maximum(q / count - mean * mean, 0.0)   # clamp: E[x^2]-E[x]^2 can dip < 0
    inv_std = jax.lax.rsqrt(var + eps)
    gamma = p_ref[0][None]                            # (1,C,1)
    beta = p_ref[1][None]
    alpha = p_ref[2][None]
    scale = gamma * inv_std
    shift = beta - mean * scale
    y = x * scale + shift
    o_ref[...] = jnp.where(y > 0, y, alpha * y).astype(o_ref.dtype)


# --------------------------------------------------------------------------
# Pass 1: per-row (= per (n, c)) sum and sum-of-squares, lane-dense accumulator.
# --------------------------------------------------------------------------
def _stats_kernel(x_ref, sum_ref, sq_ref, *, lanes_per_block):
    j = pl.program_id(1)

    @pl.when(j == 0)
    def _():
        sum_ref[...] = jnp.zeros_like(sum_ref)
        sq_ref[...] = jnp.zeros_like(sq_ref)

    # Accumulate 128-lane-aligned slices — pure VALU adds, no XLU reduce,
    # unmasked 128-wide stores into the (tr, 128) accumulator blocks.
    for k in range(lanes_per_block):
        blk = x_ref[:, pl.ds(k * 128, 128)].astype(jnp.float32)
        sum_ref[...] += blk
        sq_ref[...] += blk * blk


# --------------------------------------------------------------------------
# Pass 2: normalize (single FMA) + per-channel PReLU select.
# --------------------------------------------------------------------------
def _norm_prelu_kernel(x_ref, p_ref, o_ref):
    # x_ref: (tr, tl); p_ref: (3, tr, 1) = stacked (scale, shift, alpha) rows.
    x = x_ref[...].astype(jnp.float32)
    scale = p_ref[0]   # (tr, 1) — broadcasts along lanes
    shift = p_ref[1]
    alpha = p_ref[2]
    y = x * scale + shift
    o_ref[...] = jnp.where(y > 0, y, alpha * y).astype(o_ref.dtype)


def bn_prelu(x_nchw, gamma, beta, alpha, *, eps=_EPS,
             row_tile_target=512, lane_tile_target=1024,
             fused_vmem_budget=2 * 1024 * 1024, force_two_pass=False):
    """x_nchw: (N, C, H, W); gamma/beta/alpha: (C,). Returns (N, C, H, W)."""
    n, c, h, w = x_nchw.shape
    rows = n * c
    lanes = h * w
    lanes_p = ((lanes + 127) // 128) * 128       # lane-dense padding (e.g. 7x7 -> 128)

    # Native-layout view: spatial dims land on the lane axis, no transpose.
    x2 = x_nchw.reshape(rows, lanes)
    if lanes_p != lanes:
        x2 = jnp.pad(x2, ((0, 0), (0, lanes_p - lanes)))
    count = float(n * h * w)                     # true count (ignores the zero pad)

    # ---------------- Fused small-tensor fast path ------------------------
    if (not force_two_pass) and rows * lanes_p * 4 <= fused_vmem_budget:
        params = jnp.stack([gamma.astype(jnp.float32),
                            beta.astype(jnp.float32),
                            alpha.astype(jnp.float32)]).reshape(3, c, 1)
        x3 = x2.reshape(n, c, lanes_p)
        out3 = pl.pallas_call(
            functools.partial(_fused_kernel, count=count, eps=eps),
            out_shape=jax.ShapeDtypeStruct((n, c, lanes_p), x_nchw.dtype),
            grid=(1,),
            in_specs=[pl.BlockSpec((n, c, lanes_p), lambda i: (0, 0, 0)),
                      pl.BlockSpec((3, c, 1), lambda i: (0, 0, 0))],
            out_specs=pl.BlockSpec((n, c, lanes_p), lambda i: (0, 0, 0)),
        )(x3, params)
        if lanes_p != lanes:
            out3 = out3[..., :lanes]
        return out3.reshape(n, c, h, w)

    # ---------------- Two-pass tiled path ----------------------------------
    itemsize = jnp.dtype(x_nchw.dtype).itemsize
    row_q = max(8, 32 // itemsize)               # dtype-aware sublane quantum
    tr = _pick_tile(rows, row_tile_target, row_q)
    tl = _pick_tile(lanes_p, lane_tile_target, 128)
    grid = (rows // tr, lanes_p // tl)

    # Pass 1: per-(n, c) sum and sum of squares into (rows, 128) accumulators.
    row_sum, row_sq = pl.pallas_call(
        functools.partial(_stats_kernel, lanes_per_block=tl // 128),
        out_shape=(jax.ShapeDtypeStruct((rows, 128), jnp.float32),
                   jax.ShapeDtypeStruct((rows, 128), jnp.float32)),
        grid=grid,
        in_specs=[pl.BlockSpec((tr, tl), lambda i, j: (i, j))],
        out_specs=(pl.BlockSpec((tr, 128), lambda i, j: (i, 0)),
                   pl.BlockSpec((tr, 128), lambda i, j: (i, 0))),
        compiler_params=pltpu.CompilerParams(
            dimension_semantics=("parallel", "arbitrary")),
    )(x2)

    # Tiny per-channel epilogue (C elements; stays in XLA).
    cnt = jnp.float32(count)
    ch_sum = row_sum.reshape(n, c, 128).sum(axis=(0, 2))
    ch_sq = row_sq.reshape(n, c, 128).sum(axis=(0, 2))
    mean = ch_sum / cnt
    var = jnp.maximum(ch_sq / cnt - mean * mean, 0.0)   # biased var, clamped >= 0
    inv_std = jax.lax.rsqrt(var + eps)
    scale = gamma.astype(jnp.float32) * inv_std
    shift = beta.astype(jnp.float32) - mean * scale

    # Single stacked per-row parameter input (scale, shift, alpha) — one DMA
    # stream instead of three narrow ones; broadcast_to (no jnp.tile copies).
    params_c = jnp.stack([scale, shift, alpha.astype(jnp.float32)])           # (3, C)
    params_rows = jnp.broadcast_to(params_c[:, None, :], (3, n, c)).reshape(3, rows, 1)

    # Pass 2: normalize + PReLU (elementwise, fully parallel, lane-dense out).
    out2 = pl.pallas_call(
        _norm_prelu_kernel,
        out_shape=jax.ShapeDtypeStruct((rows, lanes_p), x_nchw.dtype),
        grid=grid,
        in_specs=[pl.BlockSpec((tr, tl), lambda i, j: (i, j)),
                  pl.BlockSpec((3, tr, 1), lambda i, j: (0, i, 0))],
        out_specs=pl.BlockSpec((tr, tl), lambda i, j: (i, j)),
        compiler_params=pltpu.CompilerParams(
            dimension_semantics=("parallel", "parallel")),
    )(x2, params_rows)

    if lanes_p != lanes:
        out2 = out2[:, :lanes]
    return out2.reshape(n, c, h, w)


def _reference(x_nchw, gamma, beta, alpha):
    # Pure-JAX reference: training-mode BN over (N, H, W) per channel + PReLU.
    mean = jnp.mean(x_nchw, axis=(0, 2, 3), keepdims=True)
    var = jnp.mean((x_nchw - mean) ** 2, axis=(0, 2, 3), keepdims=True)
    g = gamma.reshape(1, -1, 1, 1)
    b = beta.reshape(1, -1, 1, 1)
    a = alpha.reshape(1, -1, 1, 1)
    y = (x_nchw - mean) / jnp.sqrt(var + _EPS) * g + b
    return jnp.where(y > 0, y, a * y)


if __name__ == "__main__":
    def run_case(shape, force_two_pass):
        n_, c_, h_, w_ = shape
        x = jax.random.normal(jax.random.PRNGKey(0), shape, dtype=jnp.float32)
        # Deterministic, non-trivial parameters (shapes follow the module):
        #   bn.weight (C,), bn.bias (C,), prelu.weight (C,) [PyTorch default 0.25]
        gamma = 1.0 + 0.1 * jnp.arange(c_, dtype=jnp.float32)
        beta = 0.05 * jnp.arange(c_, dtype=jnp.float32)
        alpha = jnp.full((c_,), 0.25, dtype=jnp.float32)

        out = jax.block_until_ready(
            bn_prelu(x, gamma, beta, alpha, force_two_pass=force_two_pass))
        ref = _reference(x, gamma, beta, alpha)
        assert out.shape == shape
        assert jnp.allclose(out, ref, atol=1e-4, rtol=1e-4), (
            f"mismatch vs reference: shape={shape} two_pass={force_two_pass}")

    run_case((2, 4, 16, 16), False)   # fused fast path
    run_case((2, 4, 16, 16), True)    # tiled two-pass path
    run_case((2, 4, 7, 7), False)     # fused path with lane padding (49 -> 128)
    run_case((2, 4, 7, 7), True)      # two-pass path with lane padding

    print("KERNEL_OK")
</pallas_src>

<mosaic_0001>
module attributes {stable_mosaic.version = 11 : i64} {
  func.func @_fused_kernel(%arg0: i32, %arg1: memref<2x4x256xf32, #tpu.memory_space<vmem>>, %arg2: memref<3x4x1xf32, #tpu.memory_space<vmem>>, %arg3: memref<2x4x256xf32, #tpu.memory_space<vmem>>) attributes {dimension_semantics = [#tpu.dimension_semantics<arbitrary>], iteration_bounds = array<i64: 1>, scalar_prefetch = 0 : i64, scratch_operands = 0 : i64, tpu.core_type = #tpu.core_type<tc>, window_params = [{pipeline_mode = #tpu.pipeline_mode<synchronous>, transform_indices = @transform_0, window_bounds = array<i64: 2, 4, 256>}, {pipeline_mode = #tpu.pipeline_mode<synchronous>, transform_indices = @transform_1, window_bounds = array<i64: 3, 4, 1>}, {pipeline_mode = #tpu.pipeline_mode<synchronous>, transform_indices = @transform_2, window_bounds = array<i64: 2, 4, 256>}]} {
    %c0 = arith.constant 0 : index
    %c0_0 = arith.constant 0 : index
    %c0_1 = arith.constant 0 : index
    %0 = vector.load %arg1[%c0, %c0_0, %c0_1] : memref<2x4x256xf32, #tpu.memory_space<vmem>>, vector<2x4x256xf32>
    %cst = arith.constant dense<0.000000e+00> : vector<2x4xf32>
    %1 = vector.multi_reduction <add>, %0, %cst [2] : vector<2x4x256xf32> to vector<2x4xf32>
    %2 = vector.shape_cast %1 : vector<2x4xf32> to vector<2x4x1xf32>
    %cst_2 = arith.constant dense<0.000000e+00> : vector<4x1xf32>
    %3 = vector.multi_reduction <add>, %2, %cst_2 [0] : vector<2x4x1xf32> to vector<4x1xf32>
    %4 = vector.shape_cast %3 : vector<4x1xf32> to vector<1x4x1xf32>
    %5 = arith.mulf %0, %0 : vector<2x4x256xf32>
    %cst_3 = arith.constant dense<0.000000e+00> : vector<2x4xf32>
    %6 = vector.multi_reduction <add>, %5, %cst_3 [2] : vector<2x4x256xf32> to vector<2x4xf32>
    %7 = vector.shape_cast %6 : vector<2x4xf32> to vector<2x4x1xf32>
    %cst_4 = arith.constant dense<0.000000e+00> : vector<4x1xf32>
    %8 = vector.multi_reduction <add>, %7, %cst_4 [0] : vector<2x4x1xf32> to vector<4x1xf32>
    %9 = vector.shape_cast %8 : vector<4x1xf32> to vector<1x4x1xf32>
    %cst_5 = arith.constant 5.120000e+02 : f32
    %10 = vector.broadcast %cst_5 : f32 to vector<1x4x1xf32>
    %11 = arith.divf %4, %10 : vector<1x4x1xf32>
    %cst_6 = arith.constant 5.120000e+02 : f32
    %12 = vector.broadcast %cst_6 : f32 to vector<1x4x1xf32>
    %13 = arith.divf %9, %12 : vector<1x4x1xf32>
    %14 = arith.mulf %11, %11 : vector<1x4x1xf32>
    %15 = arith.subf %13, %14 : vector<1x4x1xf32>
    %cst_7 = arith.constant 0.000000e+00 : f32
    %16 = vector.broadcast %cst_7 : f32 to vector<1x4x1xf32>
    %17 = arith.maximumf %15, %16 : vector<1x4x1xf32>
    %cst_8 = arith.constant 9.99999974E-6 : f32
    %18 = vector.broadcast %cst_8 : f32 to vector<1x4x1xf32>
    %19 = arith.addf %17, %18 : vector<1x4x1xf32>
    %20 = math.rsqrt %19 : vector<1x4x1xf32>
    %c0_9 = arith.constant 0 : index
    %c0_10 = arith.constant 0 : index
    %c0_11 = arith.constant 0 : index
    %21 = vector.load %arg2[%c0_9, %c0_10, %c0_11] : memref<3x4x1xf32, #tpu.memory_space<vmem>>, vector<1x4x1xf32>
    %22 = vector.shape_cast %21 : vector<1x4x1xf32> to vector<4x1xf32>
    %23 = vector.shape_cast %22 : vector<4x1xf32> to vector<1x4x1xf32>
    %c1 = arith.constant 1 : index
    %c0_12 = arith.constant 0 : index
    %c0_13 = arith.constant 0 : index
    %24 = vector.load %arg2[%c1, %c0_12, %c0_13] : memref<3x4x1xf32, #tpu.memory_space<vmem>>, vector<1x4x1xf32>
    %25 = vector.shape_cast %24 : vector<1x4x1xf32> to vector<4x1xf32>
    %26 = vector.shape_cast %25 : vector<4x1xf32> to vector<1x4x1xf32>
    %c2 = arith.constant 2 : index
    %c0_14 = arith.constant 0 : index
    %c0_15 = arith.constant 0 : index
    %27 = vector.load %arg2[%c2, %c0_14, %c0_15] : memref<3x4x1xf32, #tpu.memory_space<vmem>>, vector<1x4x1xf32>
    %28 = vector.shape_cast %27 : vector<1x4x1xf32> to vector<4x1xf32>
    %29 = vector.shape_cast %28 : vector<4x1xf32> to vector<1x4x1xf32>
    %30 = arith.mulf %23, %20 : vector<1x4x1xf32>
    %31 = arith.mulf %11, %30 : vector<1x4x1xf32>
    %32 = arith.subf %26, %31 : vector<1x4x1xf32>
    %33 = vector.broadcast %30 : vector<1x4x1xf32> to vector<2x4x256xf32>
    %34 = arith.mulf %0, %33 : vector<2x4x256xf32>
    %35 = vector.broadcast %32 : vector<1x4x1xf32> to vector<2x4x256xf32>
    %36 = arith.addf %34, %35 : vector<2x4x256xf32>
    %cst_16 = arith.constant 0.000000e+00 : f32
    %37 = vector.broadcast %cst_16 : f32 to vector<2x4x256xf32>
    %38 = arith.cmpf ogt, %36, %37 : vector<2x4x256xf32>
    %39 = vector.broadcast %29 : vector<1x4x1xf32> to vector<2x4x256xf32>
    %40 = arith.mulf %39, %36 : vector<2x4x256xf32>
    %41 = arith.select %38, %36, %40 : vector<2x4x256xi1>, vector<2x4x256xf32>
    %c0_17 = arith.constant 0 : index
    %c0_18 = arith.constant 0 : index
    %c0_19 = arith.constant 0 : index
    %42 = vector.load %arg3[%c0_17, %c0_18, %c0_19] : memref<2x4x256xf32, #tpu.memory_space<vmem>>, vector<2x4x256xf32>
    tpu.vector_store %arg3[%c0_17, %c0_18, %c0_19], %41 {strides = array<i32>} : memref<2x4x256xf32, #tpu.memory_space<vmem>>, vector<2x4x256xf32>,
    return
  }
  func.func @transform_0(%arg0: i32) -> (i32, i32, i32) {
    %c0_i32 = arith.constant 0 : i32
    %c0_i32_0 = arith.constant 0 : i32
    %c0_i32_1 = arith.constant 0 : i32
    %c0_i32_2 = arith.constant 0 : i32
    return %c0_i32, %c0_i32_0, %c0_i32_1 : i32, i32, i32
  }
  func.func @transform_1(%arg0: i32) -> (i32, i32, i32) {
    %c0_i32 = arith.constant 0 : i32
    %c0_i32_0 = arith.constant 0 : i32
    %c0_i32_1 = arith.constant 0 : i32
    %c0_i32_2 = arith.constant 0 : i32
    return %c0_i32, %c0_i32_0, %c0_i32_1 : i32, i32, i32
  }
  func.func @transform_2(%arg0: i32) -> (i32, i32, i32) {
    %c0_i32 = arith.constant 0 : i32
    %c0_i32_0 = arith.constant 0 : i32
    %c0_i32_1 = arith.constant 0 : i32
    %c0_i32_2 = arith.constant 0 : i32
    return %c0_i32, %c0_i32_0, %c0_i32_1 : i32, i32, i32
  }
}

</mosaic_0001>

<llo_original>
// kernel: tpu_custom_call.1
$region0: #{tpu_custom_call.1}
  #allocation0 [shape = 'u32[]', space=smem, size = 0x4, offset = 0x4, fixed_abs, tag = 'smem constant byte address 0x4 - core index']
  #allocation1 [shape = 'u32[144,128]{1,0:T(1,128)}', space=vmem, size = 0x12000, scoped, tag = 'internal scratch']
  %s0 = inlined_call_operand.hbm [shape: f32[2,4,256], index: 0, kind: input, shape index: {}]
  %s1 = inlined_call_operand.vmem [shape: f32[3,4,1], index: 1, kind: input, shape index: {}]
  %s2 = inlined_call_operand.hbm [shape: f32[2,4,256], index: 2, kind: output, shape index: {}]
  %s3 = sld [smem:[#allocation0]]
  $region22: #{tpu_custom_call.1} parent=0
    _
  %s5 = ssub.s32 1, %s3
  %s6 = scalar_select 0, %s5, %s3
  $region1: #{tpu_custom_call.1} parent=0
    #allocation2 [shape = 'u8[8192]{0}', space=vmem, size = 0x2000, scoped, tag = 'input window, operand 0, single buffered']
    #allocation3 [shape = 's32[1]{0}', space=sflag, size = 0x4, scoped, tag = 'scoped memory for tpu_custom_call.1']
    #allocation4 [shape = 's32[1]{0}', space=sflag, size = 0x4, scoped, tag = 'scoped memory for tpu_custom_call.1']
    #allocation5 [shape = 'u8[8192]{0}', space=vmem, size = 0x2000, scoped, tag = 'output window, operand 0, single buffered']
    %7 = vsyncpa [#allocation3], 0
    %8 = vsyncpa [#allocation4], 0
    // Predicated region
    $region2: #{tpu_custom_call.1} parent=1 // pred_check
      _
    $region3: #{tpu_custom_call.1} parent=1 // pred_check_branch
      %10 = sbr.rel (0) target = $region5
    $region4: #{tpu_custom_call.1} parent=1 // pred_region
      %s12 = ssub.s32 256, 256
      %13 = vsyncadd [#allocation3], %s12
      %s14 = sshll.u32 [#allocation2], 4
      %s15 = int_to_ptr.vmem [resolvable:$true] %s14
      %20 = dma.hbm_to_vmem [thread:$0]  %s0, 256, %s15, [#allocation3], 128, 128, 8
    $region5: #{tpu_custom_call.1} parent=1 // pred_fallthru
      _
    // Predicated region
    $region6: #{tpu_custom_call.1} parent=1 // pred_check
      _
    $region7: #{tpu_custom_call.1} parent=1 // pred_check_branch
      %22 = sbr.rel (0) target = $region9
    $region8: #{tpu_custom_call.1} parent=1 // pred_region
      _
    $region9: #{tpu_custom_call.1} parent=1 // pred_fallthru
      _
    // Predicated region
    $region10: #{tpu_custom_call.1} parent=1 // pred_check
      _
    $region11: #{tpu_custom_call.1} parent=1 // pred_check_branch
      %24 = sbr.rel (0) target = $region13
    $region12: #{tpu_custom_call.1} parent=1 // pred_region
      %25 = dma.done [#allocation3], 256
    $region13: #{tpu_custom_call.1} parent=1 // pred_fallthru
      _
    %v26 = vld [vmem:[#allocation2] sm:$0xff]
    %v27 = vld [vmem:[#allocation2 + $0x8] sm:$0xff]
    %v30 = vcombine.high %v26, %v26
    %v31 = vcombine.high %v27, %v27
    %vm34 = vcmask 1043456
    %v35 = vsel %vm34, %v26, 0.0
    %v36 = vsel %vm34, %v30, 0.0
    %v37 = vadd.f32 %v35, %v36
    %38 = vadd.xlane.f32.xlu0 %v37
    %v39 = vpop.xlane.xlu0 %38
    %v40 = vsel %vm34, %v27, 0.0
    %v41 = vsel %vm34, %v31, 0.0
    %v42 = vadd.f32 %v40, %v41
    %43 = vadd.xlane.f32.xlu0 %v42
    %v44 = vpop.xlane.xlu0 %43
    %v45 = vsel %vm34, %v39, 0.0
    %v46 = vsel %vm34, %v44, 0.0
    %v47 = vadd.f32 %v45, %v46
    %v48 = vmul.f32 %v26, %v26
    %v49 = vmul.f32 %v27, %v27
    %v52 = vcombine.high %v48, %v48
    %v53 = vcombine.high %v49, %v49
    %v56 = vsel %vm34, %v48, 0.0
    %v57 = vsel %vm34, %v52, 0.0
    %v58 = vadd.f32 %v56, %v57
    %59 = vadd.xlane.f32.xlu0 %v58
    %v60 = vpop.xlane.xlu0 %59
    %v61 = vsel %vm34, %v49, 0.0
    %v62 = vsel %vm34, %v53, 0.0
    %v63 = vadd.f32 %v61, %v62
    %64 = vadd.xlane.f32.xlu0 %v63
    %v65 = vpop.xlane.xlu0 %64
    %v66 = vsel %vm34, %v60, 0.0
    %v67 = vsel %vm34, %v65, 0.0
    %v68 = vadd.f32 %v66, %v67
    %v69 = vrcp.pop 512.0
    %v70 = vmul.f32 %v47, %v69
    %v71 = vmul.f32 %v68, %v69
    %v72 = vmul.f32 %v70, %v70
    %v73 = vsub.f32 %v71, %v72
    %v74 = vmax.f32 %v73, 0.0
    %v75 = vadd.f32 %v74, 1e-05
    %v76 = vrsqrt.pop %v75
    %v77 = vld [vmem:[%s1] sm:$0xf]
    %s78 = scalar_lea.vmem %s1, 4
    %v79 = vld [vmem:[%s78] sm:$0xf]
    %s80 = scalar_lea.vmem %s1, 8
    %v81 = vld [vmem:[%s80] sm:$0xf]
    %v82 = vmul.f32 %v77, %v76
    %v83 = vmul.f32 %v70, %v82
    %v84 = vsub.f32 %v79, %v83
    %86 = vset.pattern.permute.xlu0 0
    %87 = vperm.xlu0 %86, %v82
    %v88 = vpop.permute.xlu0 %87
    %v90 = vunpack.c.l.s4 839922192
    %v91 = vunpack.c.0.s8 %v90
    %v92 = vlaneseq
    %v93 = vshrl.u32 %v92, 7
    %v94 = vsub.s32 %v91, %v93
    %v95 = vrot.slane %v88, %v94
    %v97 = vmul.f32 %v26, %v95
    %v98 = vmul.f32 %v27, %v95
    %100 = vset.pattern.permute.xlu0 0
    %101 = vperm.xlu0 %100, %v84
    %v102 = vpop.permute.xlu0 %101
    %v104 = vunpack.c.l.s4 839922192
    %v105 = vunpack.c.0.s8 %v104
    %v106 = vlaneseq
    %v107 = vshrl.u32 %v106, 7
    %v108 = vsub.s32 %v105, %v107
    %v109 = vrot.slane %v102, %v108
    %v111 = vadd.f32 %v97, %v109
    %v112 = vadd.f32 %v98, %v109
    %vm113 = vcmp.gt.f32.partialorder %v111, 0.0
    %vm114 = vcmp.gt.f32.partialorder %v112, 0.0
    %116 = vset.pattern.permute.xlu0 0
    %117 = vperm.xlu0 %116, %v81
    %v118 = vpop.permute.xlu0 %117
    %v122 = vcombine.high %v111, %v111
    %v123 = vcombine.high %v112, %v112
    %v126 = vmul.f32 %v118, %v111
    %v127 = vmul.f32 %v118, %v122
    %v128 = vmul.f32 %v118, %v112
    %v129 = vmul.f32 %v118, %v123
    %v134 = vcombine.low %v126, %v127
    %v135 = vcombine.low %v128, %v129
    %v138 = vsel %vm113, %v111, %v134
    %v139 = vsel %vm114, %v112, %v135
    %140 = vst [vmem:[#allocation5] sm:$0xff] %v138
    %141 = vst [vmem:[#allocation5 + $0x8] sm:$0xff] %v139
    // Predicated region
    $region14: #{tpu_custom_call.1} parent=1 // pred_check
      _
    $region15: #{tpu_custom_call.1} parent=1 // pred_check_branch
      %143 = sbr.rel (0) target = $region17
    $region16: #{tpu_custom_call.1} parent=1 // pred_region
      %s145 = ssub.s32 256, 256
      %146 = vsyncadd [#allocation4], %s145
      %s147 = sshll.u32 [#allocation5], 4
      %s148 = int_to_ptr.vmem [resolvable:$true] %s147
      %153 = dma.vmem_to_hbm [thread:$0]  %s148, 256, %s2, [#allocation4], 128, 128, 8
    $region17: #{tpu_custom_call.1} parent=1 // pred_fallthru
      _
    // Predicated region
    $region18: #{tpu_custom_call.1} parent=1 // pred_check
      _
    $region19: #{tpu_custom_call.1} parent=1 // pred_check_branch
      %155 = sbr.rel (0) target = $region21
    $region20: #{tpu_custom_call.1} parent=1 // pred_region
      %156 = dma.done [#allocation4], 256
    $region21: #{tpu_custom_call.1} parent=1 // pred_fallthru
      _
    %157 = vsyncpa [#allocation3], 1
    %158 = vsyncpa [#allocation4], 1

</llo_original>
